<compile_context>
chip_gen: v7x
topology: tpu7x:2x2x1
jax: 0.10.0
libtpu: 0.0.40
codegen_flags: <defaults>
</compile_context>

<pallas_src>
import jax
import jax.numpy as jnp
from jax.experimental import pallas as pl
from jax.experimental.pallas import tpu as pltpu


def _separate_loss_kernel(x_ref, t_ref, k_ref, ob_ref, oc_ref):
    j = pl.program_id(1)

    @pl.when(j == 0)
    def _init():
        ob_ref[...] = jnp.zeros_like(ob_ref)
        oc_ref[...] = jnp.zeros_like(oc_ref)

    # (18, T) slab of the first 18 input_k channels -> (k+1)*0.5 terms.
    # Leading size-1 batch dim is dropped by first-axis indexing (no reshape).
    k01 = (k_ref[0].astype(jnp.float32) + 1.0) * 0.5

    # Static channel split: {2,5,6} -> body, the remaining 15 of 0..17 -> cloth.
    ch = jax.lax.broadcasted_iota(jnp.int32, (18, 1), 0)
    body_w = jnp.where((ch == 2) | (ch == 5) | (ch == 6), 1.0, 0.0)
    m_body = jnp.sum(k01 * body_w, axis=0, keepdims=True)            # (1, T)
    m_cloth = jnp.sum(k01 * (1.0 - body_w), axis=0, keepdims=True)   # (1, T)

    ip1 = x_ref[0].astype(jnp.float32) + 1.0                         # (Ci, T)
    tp1 = t_ref[0].astype(jnp.float32) + 1.0

    # |input_body - targets_body| and |input_cloth - targets_cloth|
    d_body = jnp.abs((ip1 * m_body - 1.0) - (tp1 * m_body - 1.0))
    d_cloth = jnp.abs((ip1 * m_cloth - 1.0) - (tp1 * m_cloth - 1.0))

    # Per-batch running sums of absolute error, replicated across the 128
    # output lanes (lane-dense store); the wrapper reads lane 0.
    ob_ref[...] += jnp.sum(d_body)
    oc_ref[...] += jnp.sum(d_cloth)


def _pick_spatial_tile(hw, ci):
    """Largest multiple-of-128 divisor of hw under a cross-chip VMEM budget."""
    # Per-lane-column bytes per pipeline buffer: input + targets (ci channels
    # each) + 18 input_k channels, f32.
    bytes_per_lane = (2 * ci + 18) * 4
    # Conservative double-buffered budget that fits the default scoped VMEM on
    # v5e (16 MiB), v6e (32 MiB) and v7x (32 MiB of 64 MiB physical).
    budget = 4 * 1024 * 1024
    cap = max(128, (budget // (2 * bytes_per_lane)) // 128 * 128)
    if hw % 128 != 0:
        return hw  # full-extent spatial block for odd sizes (tiny images)
    cand = min(cap, hw)
    while cand >= 128:
        if hw % cand == 0:
            return cand
        cand -= 128
    return 128


def separate_loss(inp, tgt, inp_k, ratio=1.0):
    """inp/tgt: (N, Ci, H, W); inp_k: (N, Ck>=18, H, W) -> scalar loss."""
    n, ci, h, w = inp.shape
    assert tgt.shape == inp.shape
    nk, ck, hk, wk = inp_k.shape
    assert nk == n and hk == h and wk == w and ck >= 18
    hw = h * w

    # Lane-dense layout: spatial axis last; only the 18 used k-channels.
    x = inp.reshape(n, ci, hw)
    t = tgt.reshape(n, ci, hw)
    k18 = inp_k[:, :18, :, :].reshape(n, 18, hw)

    tile = _pick_spatial_tile(hw, ci)
    grid = (n, hw // tile)

    grid_spec = pltpu.PrefetchScalarGridSpec(
        num_scalar_prefetch=0,
        grid=grid,
        in_specs=[
            pl.BlockSpec((1, ci, tile), lambda i, j: (i, 0, j)),
            pl.BlockSpec((1, ci, tile), lambda i, j: (i, 0, j)),
            pl.BlockSpec((1, 18, tile), lambda i, j: (i, 0, j)),
        ],
        out_specs=[
            pl.BlockSpec((1, 1, 128), lambda i, j: (i, 0, 0)),
            pl.BlockSpec((1, 1, 128), lambda i, j: (i, 0, 0)),
        ],
    )

    out_body, out_cloth = pl.pallas_call(
        _separate_loss_kernel,
        out_shape=(
            jax.ShapeDtypeStruct((n, 1, 128), jnp.float32),
            jax.ShapeDtypeStruct((n, 1, 128), jnp.float32),
        ),
        grid_spec=grid_spec,
        compiler_params=pltpu.CompilerParams(
            dimension_semantics=("parallel", "arbitrary"),
            vmem_limit_bytes=32 * 1024 * 1024,
        ),
    )(x, t, k18)

    total = float(n * ci * hw)
    sae_body = jnp.sum(out_body[:, 0, 0])
    sae_cloth = jnp.sum(out_cloth[:, 0, 0])
    loss_body = sae_body / total
    loss_cloth = sae_cloth / total
    return (loss_body * ratio + loss_cloth * (1.0 - ratio)) * 2.0


def separate_loss_ref(inp, tgt, inp_k, ratio=1.0):
    """Pure-JAX reference mirroring the PyTorch forward."""
    idx_body = jnp.array([2, 5, 6], dtype=jnp.int32)
    idx_cloth = jnp.array([0, 1, 3, 4, 7, 8, 9, 10, 11, 12, 13, 14, 15, 16, 17],
                          dtype=jnp.int32)
    kb = jnp.take(inp_k, idx_body, axis=1)
    kc = jnp.take(inp_k, idx_cloth, axis=1)
    m_body = jnp.sum((kb + 1.0) * 0.5, axis=1, keepdims=True)
    m_cloth = jnp.sum((kc + 1.0) * 0.5, axis=1, keepdims=True)
    ib = (inp + 1.0) * m_body - 1.0
    icl = (inp + 1.0) * m_cloth - 1.0
    tb = (tgt + 1.0) * m_body - 1.0
    tcl = (tgt + 1.0) * m_cloth - 1.0
    loss_body = jnp.mean(jnp.abs(ib - tb))
    loss_cloth = jnp.mean(jnp.abs(icl - tcl))
    return (loss_body * ratio + loss_cloth * (1.0 - ratio)) * 2.0


if __name__ == "__main__":
    key = jax.random.PRNGKey(0)
    k1, k2, k3 = jax.random.split(key, 3)

    # Small shapes consistent with the module: 3-channel image pair, k-map
    # with 20 channels (indices go up to 17), 16x16 spatial, batch 2.
    N, CI, CK, H, W = 2, 3, 20, 16, 16
    RATIO = 0.7  # non-trivial ratio so both loss terms are exercised

    inp = jax.random.normal(k1, (N, CI, H, W), dtype=jnp.float32)
    tgt = jax.random.normal(k2, (N, CI, H, W), dtype=jnp.float32)
    inp_k = jax.random.uniform(k3, (N, CK, H, W), dtype=jnp.float32,
                               minval=-1.0, maxval=1.0)

    loss = separate_loss(inp, tgt, inp_k, ratio=RATIO)
    jax.block_until_ready(loss)

    ref = separate_loss_ref(inp, tgt, inp_k, ratio=RATIO)
    assert jnp.allclose(loss, ref, rtol=1e-4, atol=1e-5), (loss, ref)
    print("KERNEL_OK")
</pallas_src>

<mosaic_0001>
module attributes {stable_mosaic.version = 11 : i64} {
  func.func @_separate_loss_kernel(%arg0: i32, %arg1: i32, %arg2: memref<1x3x256xf32, #tpu.memory_space<vmem>>, %arg3: memref<1x3x256xf32, #tpu.memory_space<vmem>>, %arg4: memref<1x18x256xf32, #tpu.memory_space<vmem>>, %arg5: memref<1x1x128xf32, #tpu.memory_space<vmem>>, %arg6: memref<1x1x128xf32, #tpu.memory_space<vmem>>) attributes {dimension_semantics = [#tpu.dimension_semantics<parallel>, #tpu.dimension_semantics<arbitrary>], iteration_bounds = array<i64: 2, 1>, scalar_prefetch = 0 : i64, scratch_operands = 0 : i64, tpu.core_type = #tpu.core_type<tc>, window_params = [{transform_indices = @transform_0, window_bounds = array<i64: 1, 3, 256>}, {transform_indices = @transform_1, window_bounds = array<i64: 1, 3, 256>}, {transform_indices = @transform_2, window_bounds = array<i64: 1, 18, 256>}, {transform_indices = @transform_3, window_bounds = array<i64: 1, 1, 128>}, {transform_indices = @transform_4, window_bounds = array<i64: 1, 1, 128>}]} {
    %c0_i32 = arith.constant 0 : i32
    %0 = arith.cmpi eq, %arg1, %c0_i32 : i32
    %1 = arith.extui %0 : i1 to i32
    %c0_i32_0 = arith.constant 0 : i32
    %2 = arith.cmpi ne, %1, %c0_i32_0 : i32
    scf.if %2 {
      %cst_35 = arith.constant 0.000000e+00 : f32
      %75 = vector.broadcast %cst_35 : f32 to vector<1x1x128xf32>
      %c0_36 = arith.constant 0 : index
      %c0_37 = arith.constant 0 : index
      %c0_38 = arith.constant 0 : index
      %76 = vector.load %arg5[%c0_36, %c0_37, %c0_38] : memref<1x1x128xf32, #tpu.memory_space<vmem>>, vector<1x1x128xf32>
      tpu.vector_store %arg5[%c0_36, %c0_37, %c0_38], %75 {strides = array<i32>} : memref<1x1x128xf32, #tpu.memory_space<vmem>>, vector<1x1x128xf32>,
      %cst_39 = arith.constant 0.000000e+00 : f32
      %77 = vector.broadcast %cst_39 : f32 to vector<1x1x128xf32>
      %c0_40 = arith.constant 0 : index
      %c0_41 = arith.constant 0 : index
      %c0_42 = arith.constant 0 : index
      %78 = vector.load %arg6[%c0_40, %c0_41, %c0_42] : memref<1x1x128xf32, #tpu.memory_space<vmem>>, vector<1x1x128xf32>
      tpu.vector_store %arg6[%c0_40, %c0_41, %c0_42], %77 {strides = array<i32>} : memref<1x1x128xf32, #tpu.memory_space<vmem>>, vector<1x1x128xf32>,
    } else {
    }
    %c0 = arith.constant 0 : index
    %c0_1 = arith.constant 0 : index
    %c0_2 = arith.constant 0 : index
    %3 = vector.load %arg4[%c0, %c0_1, %c0_2] : memref<1x18x256xf32, #tpu.memory_space<vmem>>, vector<1x18x256xf32>
    %4 = vector.shape_cast %3 : vector<1x18x256xf32> to vector<18x256xf32>
    %cst = arith.constant 1.000000e+00 : f32
    %5 = vector.broadcast %cst : f32 to vector<18x256xf32>
    %6 = arith.addf %4, %5 : vector<18x256xf32>
    %cst_3 = arith.constant 5.000000e-01 : f32
    %7 = vector.broadcast %cst_3 : f32 to vector<18x256xf32>
    %8 = arith.mulf %6, %7 : vector<18x256xf32>
    %9 = tpu.iota {dimensions = array<i32: 0>} : vector<18x1xi32>
    %c2_i32 = arith.constant 2 : i32
    %10 = vector.broadcast %c2_i32 : i32 to vector<18x1xi32>
    %11 = arith.cmpi eq, %9, %10 : vector<18x1xi32>
    %c5_i32 = arith.constant 5 : i32
    %12 = vector.broadcast %c5_i32 : i32 to vector<18x1xi32>
    %13 = arith.cmpi eq, %9, %12 : vector<18x1xi32>
    %14 = arith.ori %11, %13 : vector<18x1xi1>
    %c6_i32 = arith.constant 6 : i32
    %15 = vector.broadcast %c6_i32 : i32 to vector<18x1xi32>
    %16 = arith.cmpi eq, %9, %15 : vector<18x1xi32>
    %17 = arith.ori %14, %16 : vector<18x1xi1>
    %cst_4 = arith.constant 1.000000e+00 : f32
    %cst_5 = arith.constant 0.000000e+00 : f32
    %18 = vector.broadcast %cst_4 : f32 to vector<18x1xf32>
    %19 = vector.broadcast %cst_5 : f32 to vector<18x1xf32>
    %20 = arith.select %17, %18, %19 : vector<18x1xi1>, vector<18x1xf32>
    %21 = vector.broadcast %20 : vector<18x1xf32> to vector<18x256xf32>
    %22 = arith.mulf %8, %21 : vector<18x256xf32>
    %cst_6 = arith.constant dense<0.000000e+00> : vector<256xf32>
    %23 = vector.multi_reduction <add>, %22, %cst_6 [0] : vector<18x256xf32> to vector<256xf32>
    %24 = vector.shape_cast %23 : vector<256xf32> to vector<1x256xf32>
    %cst_7 = arith.constant 1.000000e+00 : f32
    %25 = vector.broadcast %cst_7 : f32 to vector<18x1xf32>
    %26 = arith.subf %25, %20 : vector<18x1xf32>
    %27 = vector.broadcast %26 : vector<18x1xf32> to vector<18x256xf32>
    %28 = arith.mulf %8, %27 : vector<18x256xf32>
    %cst_8 = arith.constant dense<0.000000e+00> : vector<256xf32>
    %29 = vector.multi_reduction <add>, %28, %cst_8 [0] : vector<18x256xf32> to vector<256xf32>
    %30 = vector.shape_cast %29 : vector<256xf32> to vector<1x256xf32>
    %c0_9 = arith.constant 0 : index
    %c0_10 = arith.constant 0 : index
    %c0_11 = arith.constant 0 : index
    %31 = vector.load %arg2[%c0_9, %c0_10, %c0_11] : memref<1x3x256xf32, #tpu.memory_space<vmem>>, vector<1x3x256xf32>
    %32 = vector.shape_cast %31 : vector<1x3x256xf32> to vector<3x256xf32>
    %cst_12 = arith.constant 1.000000e+00 : f32
    %33 = vector.broadcast %cst_12 : f32 to vector<3x256xf32>
    %34 = arith.addf %32, %33 : vector<3x256xf32>
    %c0_13 = arith.constant 0 : index
    %c0_14 = arith.constant 0 : index
    %c0_15 = arith.constant 0 : index
    %35 = vector.load %arg3[%c0_13, %c0_14, %c0_15] : memref<1x3x256xf32, #tpu.memory_space<vmem>>, vector<1x3x256xf32>
    %36 = vector.shape_cast %35 : vector<1x3x256xf32> to vector<3x256xf32>
    %cst_16 = arith.constant 1.000000e+00 : f32
    %37 = vector.broadcast %cst_16 : f32 to vector<3x256xf32>
    %38 = arith.addf %36, %37 : vector<3x256xf32>
    %39 = vector.broadcast %24 : vector<1x256xf32> to vector<3x256xf32>
    %40 = arith.mulf %34, %39 : vector<3x256xf32>
    %cst_17 = arith.constant 1.000000e+00 : f32
    %41 = vector.broadcast %cst_17 : f32 to vector<3x256xf32>
    %42 = arith.subf %40, %41 : vector<3x256xf32>
    %43 = vector.broadcast %24 : vector<1x256xf32> to vector<3x256xf32>
    %44 = arith.mulf %38, %43 : vector<3x256xf32>
    %cst_18 = arith.constant 1.000000e+00 : f32
    %45 = vector.broadcast %cst_18 : f32 to vector<3x256xf32>
    %46 = arith.subf %44, %45 : vector<3x256xf32>
    %47 = arith.subf %42, %46 : vector<3x256xf32>
    %48 = math.absf %47 : vector<3x256xf32>
    %49 = vector.broadcast %30 : vector<1x256xf32> to vector<3x256xf32>
    %50 = arith.mulf %34, %49 : vector<3x256xf32>
    %cst_19 = arith.constant 1.000000e+00 : f32
    %51 = vector.broadcast %cst_19 : f32 to vector<3x256xf32>
    %52 = arith.subf %50, %51 : vector<3x256xf32>
    %53 = vector.broadcast %30 : vector<1x256xf32> to vector<3x256xf32>
    %54 = arith.mulf %38, %53 : vector<3x256xf32>
    %cst_20 = arith.constant 1.000000e+00 : f32
    %55 = vector.broadcast %cst_20 : f32 to vector<3x256xf32>
    %56 = arith.subf %54, %55 : vector<3x256xf32>
    %57 = arith.subf %52, %56 : vector<3x256xf32>
    %58 = math.absf %57 : vector<3x256xf32>
    %c0_21 = arith.constant 0 : index
    %c0_22 = arith.constant 0 : index
    %c0_23 = arith.constant 0 : index
    %59 = vector.load %arg5[%c0_21, %c0_22, %c0_23] : memref<1x1x128xf32, #tpu.memory_space<vmem>>, vector<1x1x128xf32>
    %60 = vector.shape_cast %48 : vector<3x256xf32> to vector<1x3x256xf32>
    %cst_24 = arith.constant dense<0.000000e+00> : vector<1xf32>
    %61 = vector.multi_reduction <add>, %60, %cst_24 [1, 2] : vector<1x3x256xf32> to vector<1xf32>
    %62 = vector.shape_cast %61 : vector<1xf32> to vector<1x1x1xf32>
    %63 = vector.extract %62[0, 0, 0] : f32 from vector<1x1x1xf32>
    %64 = vector.broadcast %63 : f32 to vector<1x1x128xf32>
    %65 = arith.addf %59, %64 : vector<1x1x128xf32>
    %c0_25 = arith.constant 0 : index
    %c0_26 = arith.constant 0 : index
    %c0_27 = arith.constant 0 : index
    %66 = vector.load %arg5[%c0_25, %c0_26, %c0_27] : memref<1x1x128xf32, #tpu.memory_space<vmem>>, vector<1x1x128xf32>
    tpu.vector_store %arg5[%c0_25, %c0_26, %c0_27], %65 {strides = array<i32>} : memref<1x1x128xf32, #tpu.memory_space<vmem>>, vector<1x1x128xf32>,
    %c0_28 = arith.constant 0 : index
    %c0_29 = arith.constant 0 : index
    %c0_30 = arith.constant 0 : index
    %67 = vector.load %arg6[%c0_28, %c0_29, %c0_30] : memref<1x1x128xf32, #tpu.memory_space<vmem>>, vector<1x1x128xf32>
    %68 = vector.shape_cast %58 : vector<3x256xf32> to vector<1x3x256xf32>
    %cst_31 = arith.constant dense<0.000000e+00> : vector<1xf32>
    %69 = vector.multi_reduction <add>, %68, %cst_31 [1, 2] : vector<1x3x256xf32> to vector<1xf32>
    %70 = vector.shape_cast %69 : vector<1xf32> to vector<1x1x1xf32>
    %71 = vector.extract %70[0, 0, 0] : f32 from vector<1x1x1xf32>
    %72 = vector.broadcast %71 : f32 to vector<1x1x128xf32>
    %73 = arith.addf %67, %72 : vector<1x1x128xf32>
    %c0_32 = arith.constant 0 : index
    %c0_33 = arith.constant 0 : index
    %c0_34 = arith.constant 0 : index
    %74 = vector.load %arg6[%c0_32, %c0_33, %c0_34] : memref<1x1x128xf32, #tpu.memory_space<vmem>>, vector<1x1x128xf32>
    tpu.vector_store %arg6[%c0_32, %c0_33, %c0_34], %73 {strides = array<i32>} : memref<1x1x128xf32, #tpu.memory_space<vmem>>, vector<1x1x128xf32>,
    return
  }
  func.func @transform_0(%arg0: i32, %arg1: i32) -> (i32, i32, i32) {
    %c0_i32 = arith.constant 0 : i32
    %c0_i32_0 = arith.constant 0 : i32
    return %arg0, %c0_i32, %arg1 : i32, i32, i32
  }
  func.func @transform_1(%arg0: i32, %arg1: i32) -> (i32, i32, i32) {
    %c0_i32 = arith.constant 0 : i32
    %c0_i32_0 = arith.constant 0 : i32
    return %arg0, %c0_i32, %arg1 : i32, i32, i32
  }
  func.func @transform_2(%arg0: i32, %arg1: i32) -> (i32, i32, i32) {
    %c0_i32 = arith.constant 0 : i32
    %c0_i32_0 = arith.constant 0 : i32
    return %arg0, %c0_i32, %arg1 : i32, i32, i32
  }
  func.func @transform_3(%arg0: i32, %arg1: i32) -> (i32, i32, i32) {
    %c0_i32 = arith.constant 0 : i32
    %c0_i32_0 = arith.constant 0 : i32
    %c0_i32_1 = arith.constant 0 : i32
    return %arg0, %c0_i32, %c0_i32_0 : i32, i32, i32
  }
  func.func @transform_4(%arg0: i32, %arg1: i32) -> (i32, i32, i32) {
    %c0_i32 = arith.constant 0 : i32
    %c0_i32_0 = arith.constant 0 : i32
    %c0_i32_1 = arith.constant 0 : i32
    return %arg0, %c0_i32, %c0_i32_0 : i32, i32, i32
  }
}

</mosaic_0001>

<llo_original>
// kernel: tpu_custom_call.1
$region0: #{tpu_custom_call.1}
  #allocation0 [shape = 'u32[]', space=smem, size = 0x4, offset = 0x4, fixed_abs, tag = 'smem constant byte address 0x4 - core index']
  #allocation1 [shape = 'u32[144,128]{1,0:T(1,128)}', space=vmem, size = 0x12000, scoped, tag = 'internal scratch']
  %s0 = inlined_call_operand.vmem [shape: f32[2,3,256], index: 0, kind: input, shape index: {}]
  %s1 = inlined_call_operand.vmem [shape: f32[2,3,256], index: 1, kind: input, shape index: {}]
  %s2 = inlined_call_operand.vmem [shape: f32[2,18,256], index: 2, kind: input, shape index: {}]
  %s3 = inlined_call_operand.hbm [shape: f32[2,1,128], index: 3, kind: output, shape index: {0}]
  %s4 = inlined_call_operand.hbm [shape: f32[2,1,128], index: 4, kind: output, shape index: {1}]
  %5 = xla_tuple %s3, %s4
  %s6 = sld [smem:[#allocation0]]
  $region57: #{tpu_custom_call.1} parent=0
    _
  %s8 = ssub.s32 1, %s6
  %s9 = scalar_select 0, %s8, %s6
  $region1: #{tpu_custom_call.1} parent=0
    #allocation2 [shape = 'u8[1024]{0}', space=vmem, size = 0x400, scoped, tag = 'output window, operand 0']
    #allocation3 [shape = 's32[2]{0}', space=sflag, size = 0x8, scoped, tag = 'scoped memory for tpu_custom_call.1']
    #allocation4 [shape = 'u8[1024]{0}', space=vmem, size = 0x400, scoped, tag = 'output window, operand 1']
    #allocation5 [shape = 's32[2]{0}', space=sflag, size = 0x8, scoped, tag = 'scoped memory for tpu_custom_call.1']
    %10 = vsyncpa [#allocation3], 0
    %s11 = scalar_lea.sflag [#allocation3], 1
    %12 = vsyncpa %s11, 0
    %13 = vsyncpa [#allocation5], 0
    %s14 = scalar_lea.sflag [#allocation5], 1
    %15 = vsyncpa %s14, 0
    loop: start=0, step=1, limit=4
    $region2: #{tpu_custom_call.1} parent=1 // loop_pre_header
      _
    $region3: #{tpu_custom_call.1} parent=1 // loop_header
      %s17 = sphi 0, %s21
      %p18 = scmp.ge.s32.totalorder %s17, 4
      %s24 = sphi 0, %s36
      %s25 = sphi 0, %s32
      %s26 = sphi 0, %s24
      %s27 = sphi 0, %s25
      %s28 = sphi 0, %s26
      %s29 = sphi 0, %s27
      %s41 = sphi 0, %s43
      %s44 = sphi 0, %s41
      %s45 = sphi 0, %s44
      %s61 = sphi 0, %s45
      %s69 = sphi 0, %s71
      %s72 = sphi 0, %s69
      %s73 = sphi 0, %s72
      %s89 = sphi 0, %s73
      %s97 = sphi 0, %s99
      %s100 = sphi 0, %s97
      %s101 = sphi 0, %s100
      %s117 = sphi 0, %s101
      %s123 = sphi 0, %s125
      %s126 = sphi 0, %s123
      %s127 = sphi 0, %s126
      %s143 = sphi 0, %s127
      %s149 = sphi 0, %s151
      %s152 = sphi 0, %s149
      %s153 = sphi 0, %s152
      %s169 = sphi 0, %s153
    $region4: #{tpu_custom_call.1} parent=1 // loop_header_branch
      %20 = sbr.rel (%p18) target = $region8
    $region5: #{tpu_custom_call.1} parent=1 // loop_body
      %s22 = ssub.s32 %s17, 1
      %s23 = ssub.s32 %s17, 2
      %s30 = sadd.s32 1, %s25
      %p31 = scmp.ge.s32.totalorder %s30, 1
      %s32 = scalar_select %p31, 0, %s30
      %s33 = sadd.s32 1, %s24
      %s34 = scalar_select %p31, %s33, %s24
      %p35 = scmp.ge.s32.totalorder %s34, 2
      %s36 = scalar_select %p35, 0, %s34
      %s37 = ssub.s32 %s24, %s36
      %s38 = ssub.s32 %s25, %s32
      %s39 = sor.u32 %s37, %s38
      %p40 = scmp.eq.s32.totalorder %s39, 0
      %s42 = sadd.s32 %s41, 1
      %s43 = scalar_select %p40, %s41, %s42
      %p46 = pneg %p40
      %p47 = scmp.eq.s32.totalorder %s17, 1
      %p48 = por %p46, %p47
      %p49 = scmp.ne.s32.totalorder %s41, %s44
      %p50 = scmp.eq.s32.totalorder %s17, 0
      %p51 = por %p49, %p50
      %p52 = scmp.ne.s32.totalorder %s41, %s44
      %p53 = scmp.eq.s32.totalorder %s22, 1
      %p54 = por %p52, %p53
      %p55 = scmp.ne.s32.totalorder %s44, %s45
      %p56 = scmp.eq.s32.totalorder %s22, 0
      %p57 = por %p55, %p56
      %p58 = scmp.ne.s32.totalorder %s44, %s45
      %p59 = scmp.eq.s32.totalorder %s23, 1
      %p60 = por %p58, %p59
      %p62 = scmp.ne.s32.totalorder %s45, %s61
      %p63 = scmp.eq.s32.totalorder %s23, 0
      %p64 = por %p62, %p63
      %s65 = ssub.s32 %s24, %s36
      %s66 = ssub.s32 %s25, %s32
      %s67 = sor.u32 %s65, %s66
      %p68 = scmp.eq.s32.totalorder %s67, 0
      %s70 = sadd.s32 %s69, 1
      %s71 = scalar_select %p68, %s69, %s70
      %p74 = pneg %p68
      %p75 = scmp.eq.s32.totalorder %s17, 1
      %p76 = por %p74, %p75
      %p77 = scmp.ne.s32.totalorder %s69, %s72
      %p78 = scmp.eq.s32.totalorder %s17, 0
      %p79 = por %p77, %p78
      %p80 = scmp.ne.s32.totalorder %s69, %s72
      %p81 = scmp.eq.s32.totalorder %s22, 1
      %p82 = por %p80, %p81
      %p83 = scmp.ne.s32.totalorder %s72, %s73
      %p84 = scmp.eq.s32.totalorder %s22, 0
      %p85 = por %p83, %p84
      %p86 = scmp.ne.s32.totalorder %s72, %s73
      %p87 = scmp.eq.s32.totalorder %s23, 1
      %p88 = por %p86, %p87
      %p90 = scmp.ne.s32.totalorder %s73, %s89
      %p91 = scmp.eq.s32.totalorder %s23, 0
      %p92 = por %p90, %p91
      %s93 = ssub.s32 %s24, %s36
      %s94 = ssub.s32 %s25, %s32
      %s95 = sor.u32 %s93, %s94
      %p96 = scmp.eq.s32.totalorder %s95, 0
      %s98 = sadd.s32 %s97, 1
      %s99 = scalar_select %p96, %s97, %s98
      %p102 = pneg %p96
      %p103 = scmp.eq.s32.totalorder %s17, 1
      %p104 = por %p102, %p103
      %p105 = scmp.ne.s32.totalorder %s97, %s100
      %p106 = scmp.eq.s32.totalorder %s17, 0
      %p107 = por %p105, %p106
      %p108 = scmp.ne.s32.totalorder %s97, %s100
      %p109 = scmp.eq.s32.totalorder %s22, 1
      %p110 = por %p108, %p109
      %p111 = scmp.ne.s32.totalorder %s100, %s101
      %p112 = scmp.eq.s32.totalorder %s22, 0
      %p113 = por %p111, %p112
      %p114 = scmp.ne.s32.totalorder %s100, %s101
      %p115 = scmp.eq.s32.totalorder %s23, 1
      %p116 = por %p114, %p115
      %p118 = scmp.ne.s32.totalorder %s101, %s117
      %p119 = scmp.eq.s32.totalorder %s23, 0
      %p120 = por %p118, %p119
      %s121 = ssub.s32 %s24, %s36
      %p122 = scmp.eq.s32.totalorder %s121, 0
      %s124 = sadd.s32 %s123, 1
      %s125 = scalar_select %p122, %s123, %s124
      %p128 = pneg %p122
      %p129 = scmp.eq.s32.totalorder %s17, 1
      %p130 = por %p128, %p129
      %p131 = scmp.ne.s32.totalorder %s123, %s126
      %p132 = scmp.eq.s32.totalorder %s17, 0
      %p133 = por %p131, %p132
      %p134 = scmp.ne.s32.totalorder %s123, %s126
      %p135 = scmp.eq.s32.totalorder %s22, 1
      %p136 = por %p134, %p135
      %p137 = scmp.ne.s32.totalorder %s126, %s127
      %p138 = scmp.eq.s32.totalorder %s22, 0
      %p139 = por %p137, %p138
      %p140 = scmp.ne.s32.totalorder %s126, %s127
      %p141 = scmp.eq.s32.totalorder %s23, 1
      %p142 = por %p140, %p141
      %p144 = scmp.ne.s32.totalorder %s127, %s143
      %p145 = scmp.eq.s32.totalorder %s23, 0
      %p146 = por %p144, %p145
      %s147 = ssub.s32 %s24, %s36
      %p148 = scmp.eq.s32.totalorder %s147, 0
      %s150 = sadd.s32 %s149, 1
      %s151 = scalar_select %p148, %s149, %s150
      %p154 = pneg %p148
      %p155 = scmp.eq.s32.totalorder %s17, 1
      %p156 = por %p154, %p155
      %p157 = scmp.ne.s32.totalorder %s149, %s152
      %p158 = scmp.eq.s32.totalorder %s17, 0
      %p159 = por %p157, %p158
      %p160 = scmp.ne.s32.totalorder %s149, %s152
      %p161 = scmp.eq.s32.totalorder %s22, 1
      %p162 = por %p160, %p161
      %p163 = scmp.ne.s32.totalorder %s152, %s153
      %p164 = scmp.eq.s32.totalorder %s22, 0
      %p165 = por %p163, %p164
      %p166 = scmp.ne.s32.totalorder %s152, %s153
      %p167 = scmp.eq.s32.totalorder %s23, 1
      %p168 = por %p166, %p167
      %p170 = scmp.ne.s32.totalorder %s153, %s169
      %p171 = scmp.eq.s32.totalorder %s23, 0
      %p172 = por %p170, %p171
      %p173 = scmp.le.s32.totalorder 1, %s17
      %p174 = scmp.lt.s32.totalorder %s17, 3
      %p175 = pnand %p173, %p174
      %p176 = pneg %p175
      // Predicated region
      $region9: #{tpu_custom_call.1} parent=5 // pred_check
        _
      $region10: #{tpu_custom_call.1} parent=5 // pred_check_branch
        %178 = sbr.rel (%p175) target = $region12
      $region11: #{tpu_custom_call.1} parent=5 // pred_region
        %s179 = ssub.s32 %s17, 1
      $region12: #{tpu_custom_call.1} parent=5 // pred_fallthru
        _
      %p180 = scmp.lt.s32.totalorder %s17, 2
      // Predicated region
      $region13: #{tpu_custom_call.1} parent=5 // pred_check
        %p181 = pneg %p180
      $region14: #{tpu_custom_call.1} parent=5 // pred_check_branch
        %183 = sbr.rel (%p181) target = $region16
      $region15: #{tpu_custom_call.1} parent=5 // pred_region
        // Predicated region
        $region17: #{tpu_custom_call.1} parent=15 // pred_check
          %p184 = pneg %p51
        $region18: #{tpu_custom_call.1} parent=15 // pred_check_branch
          %186 = sbr.rel (%p184) target = $region20
        $region19: #{tpu_custom_call.1} parent=15 // pred_region
          %s187 = smul.u32 2, %s25
          %p188 = scmp.lt.s32.totalorder %s24, 1
          %s189 = scalar_select %p188, %s24, 1
          %p190 = scmp.lt.s32.totalorder %s187, 1
          %s191 = scalar_select %p190, %s187, 1
          %s192 = smul.addr %s189, 2
          %s193 = sadd.s32 %s191, %s192
          %s194 = smul.addr %s193, 4
          %s195 = scalar_lea.vmem %s0, %s194
          %s196 = smul.u32 2, %s25
        $region20: #{tpu_custom_call.1} parent=15 // pred_fallthru
          _
        // Predicated region
        $region21: #{tpu_custom_call.1} parent=15 // pred_check
          %p197 = pneg %p79
        $region22: #{tpu_custom_call.1} parent=15 // pred_check_branch
          %199 = sbr.rel (%p197) target = $region24
        $region23: #{tpu_custom_call.1} parent=15 // pred_region
          %s200 = smul.u32 2, %s25
          %p201 = scmp.lt.s32.totalorder %s24, 1
          %s202 = scalar_select %p201, %s24, 1
          %p203 = scmp.lt.s32.totalorder %s200, 1
          %s204 = scalar_select %p203, %s200, 1
          %s205 = smul.addr %s202, 2
          %s206 = sadd.s32 %s204, %s205
          %s207 = smul.addr %s206, 4
          %s208 = scalar_lea.vmem %s1, %s207
          %s209 = smul.u32 2, %s25
        $region24: #{tpu_custom_call.1} parent=15 // pred_fallthru
          _
        // Predicated region
        $region25: #{tpu_custom_call.1} parent=15 // pred_check
          %p210 = pneg %p107
        $region26: #{tpu_custom_call.1} parent=15 // pred_check_branch
          %212 = sbr.rel (%p210) target = $region28
        $region27: #{tpu_custom_call.1} parent=15 // pred_region
          %s213 = smul.u32 2, %s25
          %p214 = scmp.lt.s32.totalorder %s24, 1
          %s215 = scalar_select %p214, %s24, 1
          %p216 = scmp.lt.s32.totalorder %s213, 1
          %s217 = scalar_select %p216, %s213, 1
          %s218 = smul.addr %s215, 6
          %s219 = sadd.s32 %s217, %s218
          %s220 = smul.addr %s219, 8
          %s221 = scalar_lea.vmem %s2, %s220
          %s222 = smul.u32 2, %s25
        $region28: #{tpu_custom_call.1} parent=15 // pred_fallthru
          _
      $region16: #{tpu_custom_call.1} parent=5 // pred_fallthru
        _
      %p223 = scmp.le.s32.totalorder 1, %s17
      %p224 = scmp.lt.s32.totalorder %s17, 3
      %p225 = pnand %p223, %p224
      %p226 = pneg %p225
      // Predicated region
      $region29: #{tpu_custom_call.1} parent=5 // pred_check
        _
      $region30: #{tpu_custom_call.1} parent=5 // pred_check_branch
        %228 = sbr.rel (%p225) target = $region32
      $region31: #{tpu_custom_call.1} parent=5 // pred_region
        %s229 = ssub.s32 %s17, 1
        %s230 = smul.u32 2, %s27
        %p231 = scmp.lt.s32.totalorder %s26, 1
        %s232 = scalar_select %p231, %s26, 1
        %p233 = scmp.lt.s32.totalorder %s230, 1
        %s234 = scalar_select %p233, %s230, 1
        %s235 = smul.addr %s232, 2
        %s236 = sadd.s32 %s234, %s235
        %s237 = smul.addr %s236, 4
        %s238 = scalar_lea.vmem %s0, %s237
        %p239 = pneg %p57
        %p240 = pneg %p54
        %s241 = smul.u32 2, %s27
        %p242 = scmp.lt.s32.totalorder %s26, 1
        %s243 = scalar_select %p242, %s26, 1
        %p244 = scmp.lt.s32.totalorder %s241, 1
        %s245 = scalar_select %p244, %s241, 1
        %s246 = smul.addr %s243, 2
        %s247 = sadd.s32 %s245, %s246
        %s248 = smul.addr %s247, 4
        %s249 = scalar_lea.vmem %s1, %s248
        %p250 = pneg %p85
        %p251 = pneg %p82
        %s252 = smul.u32 2, %s27
        %p253 = scmp.lt.s32.totalorder %s26, 1
        %s254 = scalar_select %p253, %s26, 1
        %p255 = scmp.lt.s32.totalorder %s252, 1
        %s256 = scalar_select %p255, %s252, 1
        %s257 = smul.addr %s254, 6
        %s258 = sadd.s32 %s256, %s257
        %s259 = smul.addr %s258, 8
        %s260 = scalar_lea.vmem %s2, %s259
        %p261 = pneg %p113
        %p262 = pneg %p110
        %p263 = pneg %p139
        %p264 = pneg %p136
        %s265 = sand.u32 %s126, 1
        %s266 = scalar_lea.sflag [#allocation3], %s265
        %s267 = sand.u32 %s126, 1
        %s268 = scalar_lea.vmem [#allocation2], %s267
        %p269 = pneg %p165
        %p270 = pneg %p162
        %s271 = sand.u32 %s152, 1
        %s272 = scalar_lea.sflag [#allocation5], %s271
        %s273 = sand.u32 %s152, 1
        %s274 = scalar_lea.vmem [#allocation4], %s273
        %s275 = smul.u32 2, %s27
        %p276 = scmp.lt.s32.totalorder %s26, 1
        %s277 = scalar_select %p276, %s26, 1
        %p278 = scmp.lt.s32.totalorder %s275, 1
        %s279 = scalar_select %p278, %s275, 1
        %s280 = smul.addr %s277, 2
        %s281 = sadd.s32 %s279, %s280
        %s282 = smul.addr %s281, 4
        %s283 = scalar_lea.vmem %s0, %s282
        %s284 = smul.u32 2, %s27
        %s285 = smul.u32 2, %s27
        %p286 = scmp.lt.s32.totalorder %s26, 1
        %s287 = scalar_select %p286, %s26, 1
        %p288 = scmp.lt.s32.totalorder %s285, 1
        %s289 = scalar_select %p288, %s285, 1
        %s290 = smul.addr %s287, 2
        %s291 = sadd.s32 %s289, %s290
        %s292 = smul.addr %s291, 4
        %s293 = scalar_lea.vmem %s1, %s292
        %s294 = smul.u32 2, %s27
        %s295 = smul.u32 2, %s27
        %p296 = scmp.lt.s32.totalorder %s26, 1
        %s297 = scalar_select %p296, %s26, 1
        %p298 = scmp.lt.s32.totalorder %s295, 1
        %s299 = scalar_select %p298, %s295, 1
        %s300 = smul.addr %s297, 6
        %s301 = sadd.s32 %s299, %s300
        %s302 = smul.addr %s301, 8
        %s303 = scalar_lea.vmem %s2, %s302
        %s304 = smul.u32 2, %s27
        %p305 = scmp.eq.s32.totalorder %s27, 0
        // Predicated region
        $region33: #{tpu_custom_call.1} parent=31 // pred_check
          %p306 = pneg %p305
        $region34: #{tpu_custom_call.1} parent=31 // pred_check_branch
          %308 = sbr.rel (%p306) target = $region36
        $region35: #{tpu_custom_call.1} parent=31 // pred_region
          %309 = vst [vmem:[%s268] sm:$0x1] 0.0
          %310 = vst [vmem:[%s274] sm:$0x1] 0.0
        $region36: #{tpu_custom_call.1} parent=31 // pred_fallthru
          _
        %v311 = vld [vmem:[%s303] sm:$0xff]
        %v312 = vld [vmem:[%s303 + $0x8] sm:$0xff]
        %v313 = vld [vmem:[%s303 + $0x10] sm:$0xff]
        %v314 = vld [vmem:[%s303 + $0x18] sm:$0xff]
        %v315 = vld [vmem:[%s303 + $0x20] sm:$0x3]
        %v316 = vld [vmem:[%s303 + $0x28] sm:$0x3]
        %v317 = vadd.f32 %v311, 1.0
        %v318 = vadd.f32 %v312, 1.0
        %v319 = vadd.f32 %v313, 1.0
        %v320 = vadd.f32 %v314, 1.0
        %v321 = vadd.f32 %v315, 1.0
        %v322 = vadd.f32 %v316, 1.0
        %v323 = vmul.f32 %v317, 0.5
        %v324 = vmul.f32 %v318, 0.5
        %v325 = vmul.f32 %v319, 0.5
        %v326 = vmul.f32 %v320, 0.5
        %v327 = vmul.f32 %v321, 0.5
        %v328 = vmul.f32 %v322, 0.5
        %v329 = vlaneseq
        %v330 = vshrl.u32 %v329, 7
        %v331 = vadd.s32 %v330, 8
        %v332 = vadd.s32 %v330, 16
        %vm333 = vcmp.eq.s32.totalorder %v330, 2
        %vm334 = vcmp.eq.s32.totalorder %v331, 2
        %vm335 = vcmp.eq.s32.totalorder %v332, 2
        %vm336 = vcmp.eq.s32.totalorder %v330, 5
        %vm337 = vcmp.eq.s32.totalorder %v331, 5
        %vm338 = vcmp.eq.s32.totalorder %v332, 5
        %vm339 = vmor %vm333, %vm336
        %vm340 = vmor %vm334, %vm337
        %vm341 = vmor %vm335, %vm338
        %vm342 = vcmp.eq.s32.totalorder %v330, 6
        %vm343 = vcmp.eq.s32.totalorder %v331, 6
        %vm344 = vcmp.eq.s32.totalorder %v332, 6
        %vm345 = vmor %vm339, %vm342
        %vm346 = vmor %vm340, %vm343
        %vm347 = vmor %vm341, %vm344
        %v348 = vsel %vm345, 1.0, 0.0
        %v349 = vsel %vm346, 1.0, 0.0
        %v350 = vsel %vm347, 1.0, 0.0
        %v351 = vmul.f32 %v323, %v348
        %v352 = vmul.f32 %v324, %v348
        %v353 = vmul.f32 %v325, %v349
        %v354 = vmul.f32 %v326, %v349
        %v355 = vmul.f32 %v327, %v350
        %v356 = vmul.f32 %v328, %v350
        %v357 = vadd.f32 %v351, %v353
        %vm358 = vcmask 1041408
        %v359 = vsel %vm358, %v355, 0.0
        %v360 = vadd.f32 %v357, %v359
        %v361 = vrot.slane %v360, 4
        %v362 = vadd.f32 %v360, %v361
        %v363 = vrot.slane %v362, 2
        %v364 = vadd.f32 %v362, %v363
        %v365 = vrot.slane %v364, 1
        %v366 = vadd.f32 %v364, %v365
        %v367 = vadd.f32 %v352, %v354
        %v368 = vsel %vm358, %v356, 0.0
        %v369 = vadd.f32 %v367, %v368
        %v370 = vrot.slane %v369, 4
        %v371 = vadd.f32 %v369, %v370
        %v372 = vrot.slane %v371, 2
        %v373 = vadd.f32 %v371, %v372
        %v374 = vrot.slane %v373, 1
        %v375 = vadd.f32 %v373, %v374
        %v376 = vsub.f32 1.0, %v348
        %v377 = vsub.f32 1.0, %v349
        %v378 = vsub.f32 1.0, %v350
        %v379 = vmul.f32 %v323, %v376
        %v380 = vmul.f32 %v324, %v376
        %v381 = vmul.f32 %v325, %v377
        %v382 = vmul.f32 %v326, %v377
        %v383 = vmul.f32 %v327, %v378
        %v384 = vmul.f32 %v328, %v378
        %v385 = vadd.f32 %v379, %v381
        %v386 = vsel %vm358, %v383, 0.0
        %v387 = vadd.f32 %v385, %v386
        %v388 = vrot.slane %v387, 4
        %v389 = vadd.f32 %v387, %v388
        %v390 = vrot.slane %v389, 2
        %v391 = vadd.f32 %v389, %v390
        %v392 = vrot.slane %v391, 1
        %v393 = vadd.f32 %v391, %v392
        %v394 = vadd.f32 %v380, %v382
        %v395 = vsel %vm358, %v384, 0.0
        %v396 = vadd.f32 %v394, %v395
        %v397 = vrot.slane %v396, 4
        %v398 = vadd.f32 %v396, %v397
        %v399 = vrot.slane %v398, 2
        %v400 = vadd.f32 %v398, %v399
        %v401 = vrot.slane %v400, 1
        %v402 = vadd.f32 %v400, %v401
        %v403 = vld [vmem:[%s283] sm:$0x77]
        %v404 = vadd.f32 %v403, 1.0
        %v405 = vld [vmem:[%s293] sm:$0x77]
        %v406 = vadd.f32 %v405, 1.0
        %v409 = vcombine.low %v366, %v375
        %v411 = vmul.f32 %v404, %v409
        %v412 = vsub.f32 %v411, 1.0
        %v413 = vmul.f32 %v406, %v409
        %v414 = vsub.f32 %v413, 1.0
        %v415 = vsub.f32 %v412, %v414
        %v416 = vand.u32 2147483647, %v415
        %v419 = vcombine.low %v393, %v402
        %v421 = vmul.f32 %v404, %v419
        %v422 = vsub.f32 %v421, 1.0
        %v423 = vmul.f32 %v406, %v419
        %v424 = vsub.f32 %v423, 1.0
        %v425 = vsub.f32 %v422, %v424
        %v426 = vand.u32 2147483647, %v425
        %v427 = vld [vmem:[%s268] sm:$0x1]
        %v429 = vcombine.high %v416, %v416
        %vm431 = vcmask 1042432
        %v432 = vsel %vm431, %v416, 0.0
        %v433 = vsel %vm431, %v429, 0.0
        %v434 = vadd.f32 %v432, %v433
        %435 = vadd.xlane.f32.xlu0 %v434
        %v436 = vpop.xlane.xlu0 %435
        %v437 = vrot.slane %v436, 4
        %v438 = vadd.f32 %v436, %v437
        %v439 = vrot.slane %v438, 2
        %v440 = vadd.f32 %v438, %v439
        %v441 = vrot.slane %v440, 1
        %v442 = vadd.f32 %v440, %v441
        %s443 = vtos %v442
        %v444 = vstv %s443
        %v445 = vadd.f32 %v427, %v444
        %446 = vst [vmem:[%s268] sm:$0x1] %v445
        %v447 = vld [vmem:[%s274] sm:$0x1]
        %v449 = vcombine.high %v426, %v426
        %v451 = vsel %vm431, %v426, 0.0
        %v452 = vsel %vm431, %v449, 0.0
        %v453 = vadd.f32 %v451, %v452
        %454 = vadd.xlane.f32.xlu0 %v453
        %v455 = vpop.xlane.xlu0 %454
        %v456 = vrot.slane %v455, 4
        %v457 = vadd.f32 %v455, %v456
        %v458 = vrot.slane %v457, 2
        %v459 = vadd.f32 %v457, %v458
        %v460 = vrot.slane %v459, 1
        %v461 = vadd.f32 %v459, %v460
        %s462 = vtos %v461
        %v463 = vstv %s462
        %v464 = vadd.f32 %v447, %v463
        %465 = vst [vmem:[%s274] sm:$0x1] %v464
        %s466 = sand.u32 %s126, 1
        %s467 = scalar_lea.sflag [#allocation3], %s466
        %s468 = sand.u32 %s126, 1
        %s469 = scalar_lea.vmem [#allocation2], %s468
        %s470 = sand.u32 %s152, 1
        %s471 = scalar_lea.sflag [#allocation5], %s470
        %s472 = sand.u32 %s152, 1
        %s473 = scalar_lea.vmem [#allocation4], %s472
        // Predicated region
        $region37: #{tpu_custom_call.1} parent=31 // pred_check
          %p474 = pneg %p136
        $region38: #{tpu_custom_call.1} parent=31 // pred_check_branch
          %476 = sbr.rel (%p474) target = $region40
        $region39: #{tpu_custom_call.1} parent=31 // pred_region
          %s478 = ssub.s32 16, 16
          %479 = vsyncadd %s467, %s478
          %s480 = smul.addr %s26, 16
          %s481 = scalar_lea.hbm %s3, %s480
          %s483 = sshll.u32 %s469, 4
          %s484 = int_to_ptr.vmem [resolvable:$true] %s483
          %486 = dma.vmem_to_hbm [thread:$0]  %s484, 16, %s481, %s467
        $region40: #{tpu_custom_call.1} parent=31 // pred_fallthru
          _
        // Predicated region
        $region41: #{tpu_custom_call.1} parent=31 // pred_check
          %p487 = pneg %p162
        $region42: #{tpu_custom_call.1} parent=31 // pred_check_branch
          %489 = sbr.rel (%p487) target = $region44
        $region43: #{tpu_custom_call.1} parent=31 // pred_region
          %s491 = ssub.s32 16, 16
          %492 = vsyncadd %s471, %s491
          %s493 = smul.addr %s26, 16
          %s494 = scalar_lea.hbm %s4, %s493
          %s496 = sshll.u32 %s473, 4
          %s497 = int_to_ptr.vmem [resolvable:$true] %s496
          %499 = dma.vmem_to_hbm [thread:$0]  %s497, 16, %s494, %s471
        $region44: #{tpu_custom_call.1} parent=31 // pred_fallthru
          _
      $region32: #{tpu_custom_call.1} parent=5 // pred_fallthru
        _
      %p500 = scmp.le.s32.totalorder 2, %s17
      // Predicated region
      $region45: #{tpu_custom_call.1} parent=5 // pred_check
        %p501 = pneg %p500
      $region46: #{tpu_custom_call.1} parent=5 // pred_check_branch
        %503 = sbr.rel (%p501) target = $region48
      $region47: #{tpu_custom_call.1} parent=5 // pred_region
        %s504 = ssub.s32 %s17, 2
        // Predicated region
        $region49: #{tpu_custom_call.1} parent=47 // pred_check
          %p505 = pneg %p142
        $region50: #{tpu_custom_call.1} parent=47 // pred_check_branch
          %507 = sbr.rel (%p505) target = $region52
        $region51: #{tpu_custom_call.1} parent=47 // pred_region
          %s508 = sand.u32 %s127, 1
          %s509 = scalar_lea.sflag [#allocation3], %s508
          %s510 = sand.u32 %s127, 1
          %s511 = scalar_lea.vmem [#allocation2], %s510
          %512 = dma.done %s509, 16
        $region52: #{tpu_custom_call.1} parent=47 // pred_fallthru
          _
        // Predicated region
        $region53: #{tpu_custom_call.1} parent=47 // pred_check
          %p513 = pneg %p168
        $region54: #{tpu_custom_call.1} parent=47 // pred_check_branch
          %515 = sbr.rel (%p513) target = $region56
        $region55: #{tpu_custom_call.1} parent=47 // pred_region
          %s516 = sand.u32 %s153, 1
          %s517 = scalar_lea.sflag [#allocation5], %s516
          %s518 = sand.u32 %s153, 1
          %s519 = scalar_lea.vmem [#allocation4], %s518
          %520 = dma.done %s517, 16
        $region56: #{tpu_custom_call.1} parent=47 // pred_fallthru
          _
      $region48: #{tpu_custom_call.1} parent=5 // pred_fallthru
        _
    $region6: #{tpu_custom_call.1} parent=1 // loop_footer
      %s21 = sadd.s32 1, %s17
    $region7: #{tpu_custom_call.1} parent=1 // loop_footer_branch
      %16 = sbr.rel target = $region3
    $region8: #{tpu_custom_call.1} parent=1 // loop_exit
      _
    %521 = vsyncpa [#allocation3], 1
    %s522 = scalar_lea.sflag [#allocation3], 1
    %523 = vsyncpa %s522, 1
    %524 = vsyncpa [#allocation5], 1
    %s525 = scalar_lea.sflag [#allocation5], 1
    %526 = vsyncpa %s525, 1

</llo_original>
